<compile_context>
chip_gen: v5e
topology: v5e:2x2
jax: 0.10.0
libtpu: 0.0.40
codegen_flags: <defaults>
</compile_context>

<pallas_src>
import functools

import jax
import jax.numpy as jnp
from jax import lax
from jax.experimental import pallas as pl
from jax.experimental.pallas import tpu as pltpu


def fractal_attention_kernel(xl_ref, xs_ref, w_ref, b_ref, o_ref, *, scale):
    # xl_ref: (bb, Nl, D)  xs_ref: (bb, Ns, E)  w_ref: (E, dim)  b_ref: (1, dim)
    bb, nl, d = xl_ref.shape
    ns, e = xs_ref.shape[1], xs_ref.shape[2]
    dim_out = w_ref.shape[1]

    xl = xl_ref[...]                                  # (bb, Nl, D)  f32
    xs = xs_ref[...]                                  # (bb, Ns, E)  f32
    w = w_ref[...]                                    # (E, dim)     f32 (no bf16 cast)
    bias = b_ref[...]                                 # (1, dim)     f32

    # --- means: one pass each over the whole block -------------------------
    # q as (bb, D, 1): batched matvec against a 1/Nl column contracts the seq
    # dim and lands D on sublanes directly (no relayout). Same contraction
    # pattern ('bnd,bnk->bdk') used by the reference flash-attn bwd kernels.
    inv_nl = jnp.full((bb, nl, 1), 1.0 / nl, dtype=jnp.float32)
    q_col = lax.dot_general(
        xl, inv_nl,
        dimension_numbers=(((1,), (1,)), ((0,), (0,))),
        preferred_element_type=jnp.float32)           # (bb, D, 1)
    # k as (bb, 1, E): sublane reduce with keepdims keeps E on lanes.
    k_row = jnp.sum(xs, axis=1, keepdims=True) * (scale / ns)   # (bb, 1, E)

    # --- rank-1 energy + exact softmax over lanes (all f32) ----------------
    energy = q_col * k_row                            # (bb, D, E)   VPU broadcast-mul
    m = jnp.max(energy, axis=-1, keepdims=True)
    p = jnp.exp(energy - m)                           # EUP
    att = p / jnp.sum(p, axis=-1, keepdims=True)      # exact division (no approx recip)

    # --- ONE stacked projection matmul: (bb*D, E) @ (E, dim) ---------------
    # D is a multiple of the f32 sublane tile (8), so these leading-dim
    # reshapes are layout no-ops (no data movement).
    att_w = jnp.dot(att.reshape(bb * d, e), w,
                    preferred_element_type=jnp.float32)          # (bb*D, dim)
    att_w = att_w.reshape(bb, d, dim_out)                        # (bb, D, dim)

    # --- second matmul (batched) + bias, single dense full-block store -----
    out = jnp.einsum('bnd,bdf->bnf', xl, att_w,
                     preferred_element_type=jnp.float32) + bias  # (bb, Nl, dim)
    o_ref[...] = out.astype(o_ref.dtype)


def fractal_attention(x_large, x_small, w_out_t, b_out, *, scale, batch_block=None):
    """w_out_t is the PyTorch Linear weight already transposed: (inner_dim, dim)."""
    B, Nl, D = x_large.shape
    _, Ns, E = x_small.shape
    dim_out = w_out_t.shape[1]

    # Default: whole batch in a single grid step (per-step ~0.35 us + DMA
    # latency dominates at these shapes).  For larger B, pass batch_block so
    # the 'parallel' grid axis shards across TensorCores (v7x) and the
    # input/output DMAs double-buffer.
    bb = B if batch_block is None else batch_block
    assert B % bb == 0, (B, bb)

    cost = pl.CostEstimate(
        flops=B * (2 * Nl * D                      # q matvec
                   + 5 * D * E                     # outer product + softmax elementwise
                   + 2 * D * E * dim_out           # att @ W
                   + 2 * Nl * D * dim_out          # x_large @ att_w
                   + Nl * dim_out),                # bias add
        transcendentals=B * D * E,                 # exp
        bytes_accessed=4 * (B * Nl * D + B * Ns * E + E * dim_out + dim_out
                            + B * Nl * dim_out),
    )

    kernel = functools.partial(fractal_attention_kernel, scale=scale)
    return pl.pallas_call(
        kernel,
        out_shape=jax.ShapeDtypeStruct((B, Nl, dim_out), x_large.dtype),
        grid_spec=pltpu.PrefetchScalarGridSpec(
            num_scalar_prefetch=0,
            grid=(B // bb,),
            in_specs=[
                pl.BlockSpec((bb, Nl, D), lambda i: (i, 0, 0)),
                pl.BlockSpec((bb, Ns, E), lambda i: (i, 0, 0)),
                pl.BlockSpec((E, dim_out), lambda i: (0, 0)),
                pl.BlockSpec((1, dim_out), lambda i: (0, 0)),
            ],
            out_specs=pl.BlockSpec((bb, Nl, dim_out), lambda i: (i, 0, 0)),
        ),
        compiler_params=pltpu.CompilerParams(
            dimension_semantics=("parallel",),
        ),
        cost_estimate=cost,
    )(x_large, x_small, w_out_t, b_out)


if __name__ == "__main__":
    # Small shapes consistent with the module's forward:
    #   dim = 16, heads = 1, dim_head = 128 -> inner_dim = E = 128 (to_out: Linear(128, 16))
    B, Nl, Ns = 2, 8, 8
    dim = 16
    heads, dim_head = 1, 128
    inner_dim = heads * dim_head
    scale = dim_head ** -0.5

    key = jax.random.PRNGKey(0)
    k1, k2, k3, k4 = jax.random.split(key, 4)
    x_large = jax.random.normal(k1, (B, Nl, dim), dtype=jnp.float32)
    x_small = jax.random.normal(k2, (B, Ns, inner_dim), dtype=jnp.float32)

    # Deterministic synthetic parameters for to_out = Linear(inner_dim, dim).
    # PyTorch stores weight as (dim, inner_dim); we keep it transposed (inner_dim, dim).
    w_out_t = jax.random.normal(k3, (inner_dim, dim), dtype=jnp.float32) / jnp.sqrt(
        jnp.float32(inner_dim)
    )
    b_out = 0.01 * jax.random.normal(k4, (1, dim), dtype=jnp.float32)
    # TODO(synk): Dropout(p=0.0) is an identity; no RNG/dropout mask is applied.

    out = fractal_attention(x_large, x_small, w_out_t, b_out, scale=scale)
    out = jax.block_until_ready(out)

    # Pure-JAX f32 reference (mirrors the PyTorch forward exactly).
    q_avg = jnp.mean(x_large, axis=1)                              # (B, D)
    k_avg = jnp.mean(x_small, axis=1)                              # (B, E)
    energy = jnp.einsum("bd,be->bde", q_avg, k_avg) * scale        # (B, D, E)
    att = jax.nn.softmax(energy, axis=-1)
    ref = jnp.einsum("bij,bjk->bik", x_large, att)                 # (B, Nl, E)
    ref = ref @ w_out_t + b_out[0]                                 # (B, Nl, dim)

    assert out.shape == (B, Nl, dim), out.shape
    # f32 end-to-end; only residual error is the exact matmul reassociation
    # plus MXU f32 rounding.
    err = float(jnp.max(jnp.abs(out - ref)))
    assert err < 2e-3, err
    print("KERNEL_OK")
</pallas_src>

<mosaic_0001>
module attributes {stable_mosaic.version = 11 : i64} {
  func.func @fractal_attention_kernel(%arg0: i32, %arg1: memref<2x8x16xf32, #tpu.memory_space<vmem>>, %arg2: memref<2x8x128xf32, #tpu.memory_space<vmem>>, %arg3: memref<128x16xf32, #tpu.memory_space<vmem>>, %arg4: memref<1x16xf32, #tpu.memory_space<vmem>>, %arg5: memref<2x8x16xf32, #tpu.memory_space<vmem>>) attributes {dimension_semantics = [#tpu.dimension_semantics<parallel>], iteration_bounds = array<i64: 1>, scalar_prefetch = 0 : i64, scratch_operands = 0 : i64, tpu.core_type = #tpu.core_type<tc>, window_params = [{transform_indices = @transform_0, window_bounds = array<i64: 2, 8, 16>}, {transform_indices = @transform_1, window_bounds = array<i64: 2, 8, 128>}, {pipeline_mode = #tpu.pipeline_mode<synchronous>, transform_indices = @transform_2, window_bounds = array<i64: 128, 16>}, {pipeline_mode = #tpu.pipeline_mode<synchronous>, transform_indices = @transform_3, window_bounds = array<i64: 1, 16>}, {transform_indices = @transform_4, window_bounds = array<i64: 2, 8, 16>}]} {
    %c0 = arith.constant 0 : index
    %c0_0 = arith.constant 0 : index
    %c0_1 = arith.constant 0 : index
    %0 = vector.load %arg1[%c0, %c0_0, %c0_1] : memref<2x8x16xf32, #tpu.memory_space<vmem>>, vector<2x8x16xf32>
    %c0_2 = arith.constant 0 : index
    %c0_3 = arith.constant 0 : index
    %c0_4 = arith.constant 0 : index
    %1 = vector.load %arg2[%c0_2, %c0_3, %c0_4] : memref<2x8x128xf32, #tpu.memory_space<vmem>>, vector<2x8x128xf32>
    %c0_5 = arith.constant 0 : index
    %c0_6 = arith.constant 0 : index
    %2 = vector.load %arg3[%c0_5, %c0_6] : memref<128x16xf32, #tpu.memory_space<vmem>>, vector<128x16xf32>
    %c0_7 = arith.constant 0 : index
    %c0_8 = arith.constant 0 : index
    %3 = vector.load %arg4[%c0_7, %c0_8] : memref<1x16xf32, #tpu.memory_space<vmem>>, vector<1x16xf32>
    %cst = arith.constant 1.250000e-01 : f32
    %4 = vector.broadcast %cst : f32 to vector<2x8x1xf32>
    %cst_9 = arith.constant dense<0.000000e+00> : vector<2x16x1xf32>
    %5 = tpu.matmul %0, %4, %cst_9 {dimension_numbers = #tpu.dot_dimension_numbers<[1], [1], [2], [2], [0, 0, 0, 2, 1, 2], [0], [0]>} : vector<2x8x16xf32>, vector<2x8x1xf32>, vector<2x16x1xf32> -> vector<2x16x1xf32>
    %cst_10 = arith.constant dense<0.000000e+00> : vector<2x128xf32>
    %6 = vector.multi_reduction <add>, %1, %cst_10 [1] : vector<2x8x128xf32> to vector<2x128xf32>
    %7 = vector.shape_cast %6 : vector<2x128xf32> to vector<2x1x128xf32>
    %cst_11 = arith.constant 0.0110485433 : f32
    %8 = vector.broadcast %cst_11 : f32 to vector<2x1x128xf32>
    %9 = arith.mulf %7, %8 : vector<2x1x128xf32>
    %10 = vector.broadcast %5 : vector<2x16x1xf32> to vector<2x16x128xf32>
    %11 = vector.broadcast %9 : vector<2x1x128xf32> to vector<2x16x128xf32>
    %12 = arith.mulf %10, %11 : vector<2x16x128xf32>
    %cst_12 = arith.constant dense<0xFF800000> : vector<2x16xf32>
    %13 = vector.multi_reduction <maximumf>, %12, %cst_12 [2] : vector<2x16x128xf32> to vector<2x16xf32>
    %14 = vector.shape_cast %13 : vector<2x16xf32> to vector<2x16x1xf32>
    %15 = vector.broadcast %14 : vector<2x16x1xf32> to vector<2x16x128xf32>
    %16 = arith.subf %12, %15 : vector<2x16x128xf32>
    %17 = math.exp %16 : vector<2x16x128xf32>
    %cst_13 = arith.constant dense<0.000000e+00> : vector<2x16xf32>
    %18 = vector.multi_reduction <add>, %17, %cst_13 [2] : vector<2x16x128xf32> to vector<2x16xf32>
    %19 = vector.shape_cast %18 : vector<2x16xf32> to vector<2x16x1xf32>
    %20 = vector.broadcast %19 : vector<2x16x1xf32> to vector<2x16x128xf32>
    %21 = arith.divf %17, %20 : vector<2x16x128xf32>
    %22 = vector.shape_cast %21 : vector<2x16x128xf32> to vector<32x128xf32>
    %cst_14 = arith.constant dense<0.000000e+00> : vector<32x16xf32>
    %23 = tpu.matmul %22, %2, %cst_14 {dimension_numbers = #tpu.dot_dimension_numbers<[1], [0], [0], [1], [0, 0, 1, 1], [], []>} : vector<32x128xf32>, vector<128x16xf32>, vector<32x16xf32> -> vector<32x16xf32>
    %24 = vector.shape_cast %23 : vector<32x16xf32> to vector<2x16x16xf32>
    "tpu.trace_start"() <{level = 10 : i32, message = "bnd,bdf->bnf"}> : () -> ()
    %cst_15 = arith.constant dense<0.000000e+00> : vector<2x8x16xf32>
    %25 = tpu.matmul %0, %24, %cst_15 {dimension_numbers = #tpu.dot_dimension_numbers<[2], [1], [1], [2], [0, 0, 0, 1, 1, 2], [0], [0]>} : vector<2x8x16xf32>, vector<2x16x16xf32>, vector<2x8x16xf32> -> vector<2x8x16xf32>
    "tpu.trace_stop"() : () -> ()
    %26 = vector.shape_cast %3 : vector<1x16xf32> to vector<1x1x16xf32>
    %27 = vector.broadcast %26 : vector<1x1x16xf32> to vector<2x8x16xf32>
    %28 = arith.addf %25, %27 : vector<2x8x16xf32>
    %c0_16 = arith.constant 0 : index
    %c0_17 = arith.constant 0 : index
    %c0_18 = arith.constant 0 : index
    %29 = vector.load %arg5[%c0_16, %c0_17, %c0_18] : memref<2x8x16xf32, #tpu.memory_space<vmem>>, vector<2x8x16xf32>
    tpu.vector_store %arg5[%c0_16, %c0_17, %c0_18], %28 {strides = array<i32>} : memref<2x8x16xf32, #tpu.memory_space<vmem>>, vector<2x8x16xf32>,
    return
  }
  func.func @transform_0(%arg0: i32) -> (i32, i32, i32) {
    %c0_i32 = arith.constant 0 : i32
    %c0_i32_0 = arith.constant 0 : i32
    %c0_i32_1 = arith.constant 0 : i32
    return %arg0, %c0_i32, %c0_i32_0 : i32, i32, i32
  }
  func.func @transform_1(%arg0: i32) -> (i32, i32, i32) {
    %c0_i32 = arith.constant 0 : i32
    %c0_i32_0 = arith.constant 0 : i32
    %c0_i32_1 = arith.constant 0 : i32
    return %arg0, %c0_i32, %c0_i32_0 : i32, i32, i32
  }
  func.func @transform_2(%arg0: i32) -> (i32, i32) {
    %c0_i32 = arith.constant 0 : i32
    %c0_i32_0 = arith.constant 0 : i32
    %c0_i32_1 = arith.constant 0 : i32
    return %c0_i32, %c0_i32_0 : i32, i32
  }
  func.func @transform_3(%arg0: i32) -> (i32, i32) {
    %c0_i32 = arith.constant 0 : i32
    %c0_i32_0 = arith.constant 0 : i32
    %c0_i32_1 = arith.constant 0 : i32
    return %c0_i32, %c0_i32_0 : i32, i32
  }
  func.func @transform_4(%arg0: i32) -> (i32, i32, i32) {
    %c0_i32 = arith.constant 0 : i32
    %c0_i32_0 = arith.constant 0 : i32
    %c0_i32_1 = arith.constant 0 : i32
    return %arg0, %c0_i32, %c0_i32_0 : i32, i32, i32
  }
}

</mosaic_0001>

<llo_original>
// kernel: tpu_custom_call.1
$region0: #{tpu_custom_call.1}
  #allocation0 [shape = 'u32[]', space=smem, size = 0x4, offset = 0x4, fixed_abs, tag = 'smem constant byte address 0x4 - core index']
  #allocation1 [shape = 'u32[72,128]{1,0:T(1,128)}', space=vmem, size = 0x9000, scoped, tag = 'internal scratch']
  %s0 = inlined_call_operand.vmem [shape: f32[2,8,16], index: 0, kind: input, shape index: {}]
  %s1 = inlined_call_operand.vmem [shape: f32[2,8,128], index: 1, kind: input, shape index: {}]
  %s2 = inlined_call_operand.vmem [shape: f32[128,16], index: 2, kind: input, shape index: {}]
  %s3 = inlined_call_operand.vmem [shape: f32[1,16], index: 3, kind: input, shape index: {}]
  %s4 = inlined_call_operand.hbm [shape: f32[2,8,16], index: 4, kind: output, shape index: {}]
  %s5 = sld [smem:[#allocation0]]
  $region26: #{tpu_custom_call.1} parent=0
    _
  %s7 = ssub.s32 1, %s5
  %s8 = scalar_select 0, %s7, %s5
  $region1: #{tpu_custom_call.1} parent=0
    #allocation2 [shape = 'u8[8192]{0}', space=vmem, size = 0x2000, scoped, tag = 'output window, operand 0, single buffered']
    #allocation3 [shape = 's32[1]{0}', space=sflag, size = 0x4, scoped, tag = 'scoped memory for tpu_custom_call.1']
    %9 = vsyncpa [#allocation3], 0
    // Predicated region
    $region2: #{tpu_custom_call.1} parent=1 // pred_check
      _
    $region3: #{tpu_custom_call.1} parent=1 // pred_check_branch
      %11 = sbr.rel (0) target = $region5
    $region4: #{tpu_custom_call.1} parent=1 // pred_region
      _
    $region5: #{tpu_custom_call.1} parent=1 // pred_fallthru
      _
    // Predicated region
    $region6: #{tpu_custom_call.1} parent=1 // pred_check
      _
    $region7: #{tpu_custom_call.1} parent=1 // pred_check_branch
      %13 = sbr.rel (0) target = $region9
    $region8: #{tpu_custom_call.1} parent=1 // pred_region
      _
    $region9: #{tpu_custom_call.1} parent=1 // pred_fallthru
      _
    // Predicated region
    $region10: #{tpu_custom_call.1} parent=1 // pred_check
      _
    $region11: #{tpu_custom_call.1} parent=1 // pred_check_branch
      %15 = sbr.rel (0) target = $region13
    $region12: #{tpu_custom_call.1} parent=1 // pred_region
      _
    $region13: #{tpu_custom_call.1} parent=1 // pred_fallthru
      _
    // Predicated region
    $region14: #{tpu_custom_call.1} parent=1 // pred_check
      _
    $region15: #{tpu_custom_call.1} parent=1 // pred_check_branch
      %17 = sbr.rel (0) target = $region17
    $region16: #{tpu_custom_call.1} parent=1 // pred_region
      _
    $region17: #{tpu_custom_call.1} parent=1 // pred_fallthru
      _
    %v18 = vld [vmem:[%s0] sm:$0xff]
    %v19 = vld [vmem:[%s0 + $0x8] sm:$0xff]
    %v20 = vld [vmem:[%s1] sm:$0xff]
    %v21 = vld [vmem:[%s1 + $0x8] sm:$0xff]
    %v22 = vld [vmem:[%s2] sm:$0xff]
    %v23 = vld [vmem:[%s2 + $0x8] sm:$0xff]
    %v24 = vld [vmem:[%s2 + $0x10] sm:$0xff]
    %v25 = vld [vmem:[%s2 + $0x18] sm:$0xff]
    %v26 = vld [vmem:[%s2 + $0x20] sm:$0xff]
    %v27 = vld [vmem:[%s2 + $0x28] sm:$0xff]
    %v28 = vld [vmem:[%s2 + $0x30] sm:$0xff]
    %v29 = vld [vmem:[%s2 + $0x38] sm:$0xff]
    %v30 = vld [vmem:[%s2 + $0x40] sm:$0xff]
    %v31 = vld [vmem:[%s2 + $0x48] sm:$0xff]
    %v32 = vld [vmem:[%s2 + $0x50] sm:$0xff]
    %v33 = vld [vmem:[%s2 + $0x58] sm:$0xff]
    %v34 = vld [vmem:[%s2 + $0x60] sm:$0xff]
    %v35 = vld [vmem:[%s2 + $0x68] sm:$0xff]
    %v36 = vld [vmem:[%s2 + $0x70] sm:$0xff]
    %v37 = vld [vmem:[%s2 + $0x78] sm:$0xff]
    %v38 = vld [vmem:[%s3] sm:$0x1]
    %39 = vxpose.xlu0.b32.start [1/16] %v18, 128
    %40 = vxpose.xlu0.b32.cont [2/16] 0.0, 128
    %41 = vxpose.xlu0.b32.cont [3/16] 0.0, 128
    %42 = vxpose.xlu0.b32.cont [4/16] 0.0, 128
    %43 = vxpose.xlu0.b32.cont [5/16] 0.0, 128
    %44 = vxpose.xlu0.b32.cont [6/16] 0.0, 128
    %45 = vxpose.xlu0.b32.cont [7/16] 0.0, 128
    %46 = vxpose.xlu0.b32.cont [8/16] 0.0, 128
    %47 = vxpose.xlu0.b32.cont [9/16] 0.0, 128
    %48 = vxpose.xlu0.b32.cont [10/16] 0.0, 128
    %49 = vxpose.xlu0.b32.cont [11/16] 0.0, 128
    %50 = vxpose.xlu0.b32.cont [12/16] 0.0, 128
    %51 = vxpose.xlu0.b32.cont [13/16] 0.0, 128
    %52 = vxpose.xlu0.b32.cont [14/16] 0.0, 128
    %53 = vxpose.xlu0.b32.cont [15/16] 0.0, 128
    %54 = vxpose.xlu0.b32.end [16/16] 0.0, 128
    %v55 = vpop.trf.xlu0
    %v56 = vpop.trf.xlu0
    %v57 = vpop.trf.xlu0
    %v58 = vpop.trf.xlu0
    %v59 = vpop.trf.xlu0
    %v60 = vpop.trf.xlu0
    %v61 = vpop.trf.xlu0
    %v62 = vpop.trf.xlu0
    %v63 = vpop.trf.xlu0
    %v64 = vpop.trf.xlu0
    %v65 = vpop.trf.xlu0
    %v66 = vpop.trf.xlu0
    %v67 = vpop.trf.xlu0
    %v68 = vpop.trf.xlu0
    %v69 = vpop.trf.xlu0
    %v70 = vpop.trf.xlu0
    %vm71 = vcmask 64512
    %v73 = vsel %vm71, %v55, 0
    %v76 = vsel %vm71, %v56, 0
    %78 = vmatpush.msra.mxu0 0.0
    %79 = vmatpush.msra.mxu0 0.0
    %80 = vmatpush.msra.mxu0 0.0
    %81 = vmatpush.msra.mxu0 0.0
    %82 = vmatpush.msra.mxu0 0.0
    %83 = vmatpush.msra.mxu0 0.0
    %84 = vmatpush.msra.mxu0 0.0
    %85 = vmatpush.msra.mxu0 0.0
    %86 = vmatpush.msra.mxu0 0.0
    %87 = vmatpush.msra.mxu0 0.0
    %88 = vmatpush.msra.mxu0 0.0
    %89 = vmatpush.msra.mxu0 0.0
    %90 = vmatpush.msra.mxu0 0.0
    %91 = vmatpush.msra.mxu0 0.0
    %92 = vmatpush.msra.mxu0 0.0
    %93 = vmatpush.msra.mxu0 0.125
    %94 = vmatmul.f32.gmra.mxu0 %v73
    %v95 = vpop.f32.mrf.mxu0
    %v96 = vadd.f32 0.0, %v95
    %97 = vmatmul.f32.gmra.mxu0 %v76
    %v98 = vpop.f32.mrf.mxu0
    %v99 = vadd.f32 0.0, %v98
    %100 = vdwg.mxu0
    %101 = vxpose.xlu0.b32.start [1/16] %v19, 128
    %102 = vxpose.xlu0.b32.cont [2/16] 0.0, 128
    %103 = vxpose.xlu0.b32.cont [3/16] 0.0, 128
    %104 = vxpose.xlu0.b32.cont [4/16] 0.0, 128
    %105 = vxpose.xlu0.b32.cont [5/16] 0.0, 128
    %106 = vxpose.xlu0.b32.cont [6/16] 0.0, 128
    %107 = vxpose.xlu0.b32.cont [7/16] 0.0, 128
    %108 = vxpose.xlu0.b32.cont [8/16] 0.0, 128
    %109 = vxpose.xlu0.b32.cont [9/16] 0.0, 128
    %110 = vxpose.xlu0.b32.cont [10/16] 0.0, 128
    %111 = vxpose.xlu0.b32.cont [11/16] 0.0, 128
    %112 = vxpose.xlu0.b32.cont [12/16] 0.0, 128
    %113 = vxpose.xlu0.b32.cont [13/16] 0.0, 128
    %114 = vxpose.xlu0.b32.cont [14/16] 0.0, 128
    %115 = vxpose.xlu0.b32.cont [15/16] 0.0, 128
    %116 = vxpose.xlu0.b32.end [16/16] 0.0, 128
    %v117 = vpop.trf.xlu0
    %v118 = vpop.trf.xlu0
    %v119 = vpop.trf.xlu0
    %v120 = vpop.trf.xlu0
    %v121 = vpop.trf.xlu0
    %v122 = vpop.trf.xlu0
    %v123 = vpop.trf.xlu0
    %v124 = vpop.trf.xlu0
    %v125 = vpop.trf.xlu0
    %v126 = vpop.trf.xlu0
    %v127 = vpop.trf.xlu0
    %v128 = vpop.trf.xlu0
    %v129 = vpop.trf.xlu0
    %v130 = vpop.trf.xlu0
    %v131 = vpop.trf.xlu0
    %v132 = vpop.trf.xlu0
    %v134 = vsel %vm71, %v117, 0
    %v137 = vsel %vm71, %v118, 0
    %139 = vmatpush.msra.mxu0 0.0
    %140 = vmatpush.msra.mxu0 0.0
    %141 = vmatpush.msra.mxu0 0.0
    %142 = vmatpush.msra.mxu0 0.0
    %143 = vmatpush.msra.mxu0 0.0
    %144 = vmatpush.msra.mxu0 0.0
    %145 = vmatpush.msra.mxu0 0.0
    %146 = vmatpush.msra.mxu0 0.0
    %147 = vmatpush.msra.mxu0 0.0
    %148 = vmatpush.msra.mxu0 0.0
    %149 = vmatpush.msra.mxu0 0.0
    %150 = vmatpush.msra.mxu0 0.0
    %151 = vmatpush.msra.mxu0 0.0
    %152 = vmatpush.msra.mxu0 0.0
    %153 = vmatpush.msra.mxu0 0.0
    %154 = vmatpush.msra.mxu0 0.125
    %155 = vmatmul.f32.gmra.mxu0 %v134
    %v156 = vpop.f32.mrf.mxu0
    %v157 = vadd.f32 0.0, %v156
    %158 = vmatmul.f32.gmra.mxu0 %v137
    %v159 = vpop.f32.mrf.mxu0
    %v160 = vadd.f32 0.0, %v159
    %161 = vdwg.mxu0
    %v162 = vrot.slane %v20, 4
    %v163 = vadd.f32 %v20, %v162
    %v164 = vrot.slane %v163, 2
    %v165 = vadd.f32 %v163, %v164
    %v166 = vrot.slane %v165, 1
    %v167 = vadd.f32 %v165, %v166
    %v168 = vrot.slane %v21, 4
    %v169 = vadd.f32 %v21, %v168
    %v170 = vrot.slane %v169, 2
    %v171 = vadd.f32 %v169, %v170
    %v172 = vrot.slane %v171, 1
    %v173 = vadd.f32 %v171, %v172
    %v174 = vmul.f32 %v167, 0.011048543
    %v175 = vmul.f32 %v173, 0.011048543
    %177 = vset.pattern.permute.xlu0 0
    %178 = vperm.xlu0 %177, %v96
    %v179 = vpop.permute.xlu0 %178
    %182 = vset.pattern.permute.xlu0 0
    %183 = vperm.xlu0 %182, %v99
    %v184 = vpop.permute.xlu0 %183
    %187 = vset.pattern.permute.xlu0 0
    %188 = vperm.xlu0 %187, %v157
    %v189 = vpop.permute.xlu0 %188
    %192 = vset.pattern.permute.xlu0 0
    %193 = vperm.xlu0 %192, %v160
    %v194 = vpop.permute.xlu0 %193
    %v196 = vmul.f32 %v179, %v174
    %v197 = vmul.f32 %v184, %v174
    %v198 = vmul.f32 %v189, %v175
    %v199 = vmul.f32 %v194, %v175
    %200 = vmax.xlane.f32.xlu0 %v196
    %v201 = vpop.xlane.xlu0 %200
    %202 = vmax.xlane.f32.xlu0 %v197
    %v203 = vpop.xlane.xlu0 %202
    %204 = vmax.xlane.f32.xlu0 %v198
    %v205 = vpop.xlane.xlu0 %204
    %206 = vmax.xlane.f32.xlu0 %v199
    %v207 = vpop.xlane.xlu0 %206
    %v208 = vsub.f32 %v196, %v201
    %v209 = vsub.f32 %v197, %v203
    %v210 = vsub.f32 %v198, %v205
    %v211 = vsub.f32 %v199, %v207
    %v212 = vmul.f32 %v208, 1.442695
    %v213 = vpow.pop %v212
    %v214 = vmul.f32 %v209, 1.442695
    %v215 = vpow.pop %v214
    %v216 = vmul.f32 %v210, 1.442695
    %v217 = vpow.pop %v216
    %v218 = vmul.f32 %v211, 1.442695
    %v219 = vpow.pop %v218
    %220 = vadd.xlane.f32.xlu0 %v213
    %v221 = vpop.xlane.xlu0 %220
    %222 = vadd.xlane.f32.xlu0 %v215
    %v223 = vpop.xlane.xlu0 %222
    %224 = vadd.xlane.f32.xlu0 %v217
    %v225 = vpop.xlane.xlu0 %224
    %226 = vadd.xlane.f32.xlu0 %v219
    %v227 = vpop.xlane.xlu0 %226
    %v228 = vrcp.pop %v221
    %v229 = vmul.f32 %v221, %v228
    %v230 = vsub.f32 1.0, %v229
    %v231 = vmul.f32 %v228, %v230
    %v232 = vadd.f32 %v228, %v231
    %vm233 = vweird.f32 %v221
    %vm234 = vweird.f32 %v228
    %vm235 = vmor %vm233, %vm234
    %v236 = vsel %vm235, %v228, %v232
    %v237 = vand.u32 2147483647, %v221
    %vm238 = vcmp.eq.f32.partialorder %v237, 8.507059e+37
    %v239 = vand.u32 %v221, 2147483648
    %v240 = vor.u32 1.1754944e-38, %v239
    %v241 = vsel %vm238, %v240, %v236
    %v242 = vmul.f32 %v213, %v241
    %v243 = vrcp.pop %v223
    %v244 = vmul.f32 %v223, %v243
    %v245 = vsub.f32 1.0, %v244
    %v246 = vmul.f32 %v243, %v245
    %v247 = vadd.f32 %v243, %v246
    %vm248 = vweird.f32 %v223
    %vm249 = vweird.f32 %v243
    %vm250 = vmor %vm248, %vm249
    %v251 = vsel %vm250, %v243, %v247
    %v252 = vand.u32 2147483647, %v223
    %vm253 = vcmp.eq.f32.partialorder %v252, 8.507059e+37
    %v254 = vand.u32 %v223, 2147483648
    %v255 = vor.u32 1.1754944e-38, %v254
    %v256 = vsel %vm253, %v255, %v251
    %v257 = vmul.f32 %v215, %v256
    %v258 = vrcp.pop %v225
    %v259 = vmul.f32 %v225, %v258
    %v260 = vsub.f32 1.0, %v259
    %v261 = vmul.f32 %v258, %v260
    %v262 = vadd.f32 %v258, %v261
    %vm263 = vweird.f32 %v225
    %vm264 = vweird.f32 %v258
    %vm265 = vmor %vm263, %vm264
    %v266 = vsel %vm265, %v258, %v262
    %v267 = vand.u32 2147483647, %v225
    %vm268 = vcmp.eq.f32.partialorder %v267, 8.507059e+37
    %v269 = vand.u32 %v225, 2147483648
    %v270 = vor.u32 1.1754944e-38, %v269
    %v271 = vsel %vm268, %v270, %v266
    %v272 = vmul.f32 %v217, %v271
    %v273 = vrcp.pop %v227
    %v274 = vmul.f32 %v227, %v273
    %v275 = vsub.f32 1.0, %v274
    %v276 = vmul.f32 %v273, %v275
    %v277 = vadd.f32 %v273, %v276
    %vm278 = vweird.f32 %v227
    %vm279 = vweird.f32 %v273
    %vm280 = vmor %vm278, %vm279
    %v281 = vsel %vm280, %v273, %v277
    %v282 = vand.u32 2147483647, %v227
    %vm283 = vcmp.eq.f32.partialorder %v282, 8.507059e+37
    %v284 = vand.u32 %v227, 2147483648
    %v285 = vor.u32 1.1754944e-38, %v284
    %v286 = vsel %vm283, %v285, %v281
    %v287 = vmul.f32 %v219, %v286
    %288 = vmatpush.msra.mxu0 %v37
    %289 = vmatpush.msra.mxu0 %v36
    %290 = vmatpush.msra.mxu0 %v35
    %291 = vmatpush.msra.mxu0 %v34
    %292 = vmatpush.msra.mxu0 %v33
    %293 = vmatpush.msra.mxu0 %v32
    %294 = vmatpush.msra.mxu0 %v31
    %295 = vmatpush.msra.mxu0 %v30
    %296 = vmatpush.msra.mxu0 %v29
    %297 = vmatpush.msra.mxu0 %v28
    %298 = vmatpush.msra.mxu0 %v27
    %299 = vmatpush.msra.mxu0 %v26
    %300 = vmatpush.msra.mxu0 %v25
    %301 = vmatpush.msra.mxu0 %v24
    %302 = vmatpush.msra.mxu0 %v23
    %303 = vmatpush.msra.mxu0 %v22
    %304 = vmatmul.f32.gmra.mxu0 %v242
    %v305 = vpop.f32.mrf.mxu0
    %v306 = vadd.f32 0.0, %v305
    %307 = vmatmul.f32.gmra.mxu0 %v257
    %v308 = vpop.f32.mrf.mxu0
    %v309 = vadd.f32 0.0, %v308
    %310 = vmatmul.f32.gmra.mxu0 %v272
    %v311 = vpop.f32.mrf.mxu0
    %v312 = vadd.f32 0.0, %v311
    %313 = vmatmul.f32.gmra.mxu0 %v287
    %v314 = vpop.f32.mrf.mxu0
    %v315 = vadd.f32 0.0, %v314
    %316 = vdwg.mxu0
    %v318 = vperm.slane %v38, 0
    %vm320 = vcmask 130048
    %v322 = vsel %vm320, %v18, 0
    %324 = vmatpush.msra.mxu0 0.0
    %325 = vmatpush.msra.mxu0 0.0
    %326 = vmatpush.msra.mxu0 0.0
    %327 = vmatpush.msra.mxu0 0.0
    %328 = vmatpush.msra.mxu0 0.0
    %329 = vmatpush.msra.mxu0 0.0
    %330 = vmatpush.msra.mxu0 0.0
    %331 = vmatpush.msra.mxu0 0.0
    %332 = vmatpush.msra.mxu0 0.0
    %333 = vmatpush.msra.mxu0 0.0
    %334 = vmatpush.msra.mxu0 0.0
    %335 = vmatpush.msra.mxu0 0.0
    %336 = vmatpush.msra.mxu0 0.0
    %337 = vmatpush.msra.mxu0 0.0
    %338 = vmatpush.msra.mxu0 %v309
    %339 = vmatpush.msra.mxu0 %v306
    %340 = vmatmul.f32.gmra.mxu0 %v322
    %v341 = vpop.f32.mrf.mxu0
    %v342 = vadd.f32 %v318, %v341
    %343 = vdwg.mxu0
    %v345 = vsel %vm320, %v19, 0
    %347 = vmatpush.msra.mxu0 0.0
    %348 = vmatpush.msra.mxu0 0.0
    %349 = vmatpush.msra.mxu0 0.0
    %350 = vmatpush.msra.mxu0 0.0
    %351 = vmatpush.msra.mxu0 0.0
    %352 = vmatpush.msra.mxu0 0.0
    %353 = vmatpush.msra.mxu0 0.0
    %354 = vmatpush.msra.mxu0 0.0
    %355 = vmatpush.msra.mxu0 0.0
    %356 = vmatpush.msra.mxu0 0.0
    %357 = vmatpush.msra.mxu0 0.0
    %358 = vmatpush.msra.mxu0 0.0
    %359 = vmatpush.msra.mxu0 0.0
    %360 = vmatpush.msra.mxu0 0.0
    %361 = vmatpush.msra.mxu0 %v315
    %362 = vmatpush.msra.mxu0 %v312
    %363 = vmatmul.f32.gmra.mxu0 %v345
    %v364 = vpop.f32.mrf.mxu0
    %v365 = vadd.f32 %v318, %v364
    %366 = vdwg.mxu0
    %367 = vst.msk [vmem:[#allocation2] sm:$0xff] %vm320, %v342
    %368 = vst.msk [vmem:[#allocation2 + $0x8] sm:$0xff] %vm320, %v365
    // Predicated region
    $region18: #{tpu_custom_call.1} parent=1 // pred_check
      _
    $region19: #{tpu_custom_call.1} parent=1 // pred_check_branch
      %370 = sbr.rel (0) target = $region21
    $region20: #{tpu_custom_call.1} parent=1 // pred_region
      %372 = vsyncadd [#allocation3], 0
      %s373 = sshll.u32 [#allocation2], 4
      %s374 = int_to_ptr.vmem [resolvable:$true] %s373
      %s375 = sshll.u32 %s4, 4
      %s376 = int_to_ptr.hbm [resolvable:$true] %s375
      %381 = dma.vmem_to_hbm [thread:$0]  %s374, 256, %s376, [#allocation3], 128, 128, 8
    $region21: #{tpu_custom_call.1} parent=1 // pred_fallthru
      _
    // Predicated region
    $region22: #{tpu_custom_call.1} parent=1 // pred_check
      _
    $region23: #{tpu_custom_call.1} parent=1 // pred_check_branch
      %383 = sbr.rel (0) target = $region25
    $region24: #{tpu_custom_call.1} parent=1 // pred_region
      %385 = dma.done [#allocation3], 256
    $region25: #{tpu_custom_call.1} parent=1 // pred_fallthru
      _
    %386 = vsyncpa [#allocation3], 1

</llo_original>
